<compile_context>
chip_gen: v7x
topology: tpu7x:2x2x1
jax: 0.10.0
libtpu: 0.0.40
codegen_flags: <defaults>
</compile_context>

<pallas_src>
import math
from functools import partial

import numpy as np
import jax
import jax.numpy as jnp
from jax.experimental import pallas as pl
from jax.experimental.pallas import tpu as pltpu


def _conv2d_cd_kernel(x_ref, t_ref, o_ref):
    """One row-tile grid step.

    x_ref: (block_rows, 3*W*C)  im2col'd input rows (H border pre-padded,
                                W border absorbed into the Toeplitz weight)
    t_ref: (3*W*C, W*O)         theta-folded, fully im2col'd weight (resident)
    o_ref: (block_rows, W*O)    lane-dense output row tile
    """
    o_ref[...] = jnp.dot(x_ref[...], t_ref[...],
                         preferred_element_type=jnp.float32).astype(o_ref.dtype)


def conv2d_cd_nhwc(x_nhwc, w_hwio, theta=0.7, *, compute_dtype=jnp.bfloat16,
                   block_rows=None):
    """x_nhwc: (N, H, W, C); w_hwio: (3, 3, C, O). Returns NHWC (N, H, W, O)."""
    N, H, W, C = x_nhwc.shape
    KH, KW, C_w, O = w_hwio.shape
    assert (KH, KW) == (3, 3) and C_w == C, "only the module's 3x3 / groups=1 case"
    out_dtype = x_nhwc.dtype
    K = 3 * W * C           # contraction axis after full im2col
    WO = W * O              # output lane axis (multiple of 128 at these shapes)

    # ---- weight prep (tiny, plain JAX, once per call) ------------------------
    w_eff = w_hwio.astype(jnp.float32)
    # Fold the central-difference term into the centre tap:
    #   conv(x, W, pad=1) - theta * conv(x, W.sum((0,1)), pad=0)
    #     == conv(x, W', pad=1)   with  W'[1,1] = W[1,1] - theta * W.sum((0,1))
    w_eff = w_eff.at[1, 1].add(-theta * w_eff.sum(axis=(0, 1)))
    # Width-Toeplitz expansion (absorbs the pad=1 zero border along W), then
    # fold kh onto K:  t[kh*W*C + u*C + c, w*O + o] = W'[kh, u-w+1, c, o]
    # inside the band.
    band = np.zeros((3, W, W), np.float32)
    for kw in range(3):
        for w in range(W):
            u = w + kw - 1
            if 0 <= u < W:
                band[kw, u, w] = 1.0
    t = jnp.einsum("hkco,kuw->hucwo", w_eff, jnp.asarray(band))
    t = t.reshape(K, WO).astype(compute_dtype)
    # NOTE(scaling): the resident weight is 3*(W*C)*(W*O) elements (quadratic
    # in W).  Before using large spatial W, add a W-tile grid axis over the
    # W*O lane axis (and matching output columns) and set vmem_limit_bytes —
    # v7x has only 64 MiB physical / 32 MiB default scoped VMEM.

    # ---- input prep: cast FIRST, pad H by 1, im2col kh onto the K axis -------
    xh = jnp.pad(x_nhwc.astype(compute_dtype), ((0, 0), (1, 1), (0, 0), (0, 0)))
    # x3[n*H + h, kh*W*C + w*C + c] = xh[n, h + kh, w, c]
    x3 = jnp.stack([xh[:, kh:kh + H] for kh in range(3)], axis=2)
    x3 = x3.reshape(N * H, K)

    # ---- row tiling (batch folded into M; per-image H pad keeps images apart)
    total_rows = N * H
    if block_rows is None:
        block_rows = total_rows
        # Largest tile that is a multiple of 16 (bf16 sublane packing), capped
        # at 256, leaving >=2 grid steps when divisible so both v7x
        # TensorCores get work.  At the test shapes: block_rows = 16.
        for cand in (256, 128, 64, 32, 16):
            if cand < total_rows and total_rows % cand == 0:
                block_rows = cand
                break
    assert total_rows % block_rows == 0
    assert block_rows % 8 == 0 or block_rows == total_rows
    n_tiles = total_rows // block_rows

    cost = pl.CostEstimate(
        # MXU work actually executed (Toeplitz band zeros are multiplied too).
        flops=2 * total_rows * K * WO,
        transcendentals=0,
        bytes_accessed=int(x3.size) * x3.dtype.itemsize
        + int(t.size) * t.dtype.itemsize
        + total_rows * WO * np.dtype(out_dtype).itemsize)

    out2 = pl.pallas_call(
        _conv2d_cd_kernel,
        out_shape=jax.ShapeDtypeStruct((total_rows, WO), out_dtype),
        grid_spec=pltpu.PrefetchScalarGridSpec(
            num_scalar_prefetch=0,
            grid=(n_tiles,),
            in_specs=[
                pl.BlockSpec((block_rows, K), lambda i: (i, 0)),
                pl.BlockSpec((K, WO), lambda i: (0, 0)),   # weight resident
            ],
            out_specs=pl.BlockSpec((block_rows, WO), lambda i: (i, 0)),
        ),
        compiler_params=pltpu.CompilerParams(
            dimension_semantics=("parallel",)),
        cost_estimate=cost,
    )(x3, t)

    return out2.reshape(N, H, W, O)


def conv2d_cd(x_nchw, weight_oihw, theta=0.7, *, compute_dtype=jnp.bfloat16,
              block_rows=None):
    """PyTorch-layout entry point: x (N,C,H,W), weight (O,C,3,3) -> (N,O,H,W)."""
    # Layout glue only -- in an NHWC end-to-end model call conv2d_cd_nhwc and
    # these transposes vanish.
    x_nhwc = jnp.transpose(x_nchw, (0, 2, 3, 1))
    w_hwio = jnp.transpose(weight_oihw, (2, 3, 1, 0))
    out_nhwc = conv2d_cd_nhwc(x_nhwc, w_hwio, theta,
                              compute_dtype=compute_dtype, block_rows=block_rows)
    return jnp.transpose(out_nhwc, (0, 3, 1, 2))


def _reference(x_nchw, weight_oihw, theta):
    """Plain-JAX reference mirroring the PyTorch forward (for sanity check)."""
    dn = jax.lax.conv_dimension_numbers(x_nchw.shape, weight_oihw.shape,
                                        ("NCHW", "OIHW", "NCHW"))
    out_normal = jax.lax.conv_general_dilated(
        x_nchw, weight_oihw, window_strides=(1, 1), padding=((1, 1), (1, 1)),
        dimension_numbers=dn)
    k_diff = weight_oihw.sum(axis=(2, 3))[:, :, None, None]
    out_diff = jax.lax.conv_general_dilated(
        x_nchw, k_diff, window_strides=(1, 1), padding=((0, 0), (0, 0)),
        dimension_numbers=dn)
    return out_normal - theta * out_diff


if __name__ == "__main__":
    # Small shapes consistent with the module: N=2, C_in=4, C_out=8, H=W=16.
    N, C_in, C_out, H, W = 2, 4, 8, 16, 16
    theta = 0.7

    key = jax.random.PRNGKey(0)
    kx, kw = jax.random.split(key)
    x = jax.random.normal(kx, (N, C_in, H, W), dtype=jnp.float32)
    # Deterministic weight init (Conv2d weight shape: (out, in, 3, 3)); bias=False.
    fan_in = C_in * 3 * 3
    bound = 1.0 / math.sqrt(fan_in)
    weight = jax.random.uniform(kw, (C_out, C_in, 3, 3), dtype=jnp.float32,
                                minval=-bound, maxval=bound)

    ref = _reference(x, weight, theta)

    # f32 compute path: tight check of the theta-folded / im2col formulation.
    f32_fn = jax.jit(partial(conv2d_cd, theta=theta, compute_dtype=jnp.float32))
    out_f32 = jax.block_until_ready(f32_fn(x, weight))
    assert out_f32.shape == (N, C_out, H, W)
    assert jnp.allclose(out_f32, ref, atol=1e-4, rtol=1e-4)

    # Default bf16 MXU path (f32 accumulation): intentional accuracy trade-off
    # vs. the PyTorch f32 module -> loose tolerance.
    bf16_fn = jax.jit(partial(conv2d_cd, theta=theta))
    out_bf16 = jax.block_until_ready(bf16_fn(x, weight))
    assert out_bf16.shape == (N, C_out, H, W)
    assert jnp.allclose(out_bf16, ref, atol=2e-2, rtol=2e-2)

    print("KERNEL_OK")
</pallas_src>

<mosaic_0001>
module attributes {stable_mosaic.version = 11 : i64} {
  func.func @_conv2d_cd_kernel(%arg0: i32, %arg1: memref<16x192xf32, #tpu.memory_space<vmem>>, %arg2: memref<192x128xf32, #tpu.memory_space<vmem>>, %arg3: memref<16x128xf32, #tpu.memory_space<vmem>>) attributes {dimension_semantics = [#tpu.dimension_semantics<parallel>], iteration_bounds = array<i64: 2>, scalar_prefetch = 0 : i64, scratch_operands = 0 : i64, tpu.core_type = #tpu.core_type<tc>, window_params = [{transform_indices = @transform_0, window_bounds = array<i64: 16, 192>}, {pipeline_mode = #tpu.pipeline_mode<synchronous>, transform_indices = @transform_1, window_bounds = array<i64: 192, 128>}, {transform_indices = @transform_2, window_bounds = array<i64: 16, 128>}]} {
    %c0 = arith.constant 0 : index
    %c0_0 = arith.constant 0 : index
    %0 = vector.load %arg1[%c0, %c0_0] : memref<16x192xf32, #tpu.memory_space<vmem>>, vector<16x192xf32>
    %c0_1 = arith.constant 0 : index
    %c0_2 = arith.constant 0 : index
    %1 = vector.load %arg2[%c0_1, %c0_2] : memref<192x128xf32, #tpu.memory_space<vmem>>, vector<192x128xf32>
    %cst = arith.constant dense<0.000000e+00> : vector<16x128xf32>
    %2 = tpu.matmul %0, %1, %cst {dimension_numbers = #tpu.dot_dimension_numbers<[1], [0], [0], [1], [0, 0, 1, 1], [], []>} : vector<16x192xf32>, vector<192x128xf32>, vector<16x128xf32> -> vector<16x128xf32>
    %c0_3 = arith.constant 0 : index
    %c0_4 = arith.constant 0 : index
    %3 = vector.load %arg3[%c0_3, %c0_4] : memref<16x128xf32, #tpu.memory_space<vmem>>, vector<16x128xf32>
    tpu.vector_store %arg3[%c0_3, %c0_4], %2 {strides = array<i32>} : memref<16x128xf32, #tpu.memory_space<vmem>>, vector<16x128xf32>,
    return
  }
  func.func @transform_0(%arg0: i32) -> (i32, i32) {
    %c0_i32 = arith.constant 0 : i32
    %c0_i32_0 = arith.constant 0 : i32
    return %arg0, %c0_i32 : i32, i32
  }
  func.func @transform_1(%arg0: i32) -> (i32, i32) {
    %c0_i32 = arith.constant 0 : i32
    %c0_i32_0 = arith.constant 0 : i32
    %c0_i32_1 = arith.constant 0 : i32
    return %c0_i32, %c0_i32_0 : i32, i32
  }
  func.func @transform_2(%arg0: i32) -> (i32, i32) {
    %c0_i32 = arith.constant 0 : i32
    %c0_i32_0 = arith.constant 0 : i32
    return %arg0, %c0_i32 : i32, i32
  }
}

</mosaic_0001>

<llo_original>
// kernel: conv2d_cd.1
$region0: #{conv2d_cd.1}
  #allocation0 [shape = 'u32[]', space=smem, size = 0x4, offset = 0x4, fixed_abs, tag = 'smem constant byte address 0x4 - core index']
  #allocation1 [shape = 'u32[144,128]{1,0:T(1,128)}', space=vmem, size = 0x12000, scoped, tag = 'internal scratch']
  %s0 = inlined_call_operand.vmem [shape: f32[32,192], index: 0, kind: input, shape index: {}]
  %s1 = inlined_call_operand.vmem [shape: f32[192,128], index: 1, kind: input, shape index: {}]
  %s2 = inlined_call_operand.vmem [shape: f32[32,128], index: 2, kind: output, shape index: {}]
  %s3 = sld [smem:[#allocation0]]
  $region41: #{conv2d_cd.1} parent=0
    _
  %s5 = ssub.s32 1, %s3
  %s6 = scalar_select 0, %s5, %s3
  loop: start=0, step=1, limit=4
  $region2: #{conv2d_cd.1} parent=0 // loop_pre_header
    _
  $region3: #{conv2d_cd.1} parent=0 // loop_header
    %s8 = sphi 0, %s12
    %p9 = scmp.ge.s32.totalorder %s8, 4
    %s18 = sphi 0, %s20
    %s21 = sphi 0, %s18
    %s22 = sphi 0, %s21
    %s38 = sphi 0, %s22
    %s42 = sphi 0, %s42
    %s44 = sphi 0, %s42
    %s45 = sphi 0, %s44
    %s59 = sphi 0, %s45
    %s65 = sphi 0, %s67
    %s68 = sphi 0, %s65
    %s69 = sphi 0, %s68
    %s85 = sphi 0, %s69
  $region4: #{conv2d_cd.1} parent=0 // loop_header_branch
    %11 = sbr.rel (%p9) target = $region8
  $region5: #{conv2d_cd.1} parent=0 // loop_body
    %s13 = ssub.s32 %s8, 1
    %s14 = ssub.s32 %s8, 2
    %s15 = sadd.s32 %s8, 1
    %s16 = ssub.s32 %s8, %s15
    %p17 = scmp.eq.s32.totalorder %s16, 0
    %s19 = sadd.s32 %s18, 1
    %s20 = scalar_select %p17, %s18, %s19
    %p23 = pneg %p17
    %p24 = scmp.eq.s32.totalorder %s8, 1
    %p25 = por %p23, %p24
    %p26 = scmp.ne.s32.totalorder %s18, %s21
    %p27 = scmp.eq.s32.totalorder %s8, 0
    %p28 = por %p26, %p27
    %p29 = scmp.ne.s32.totalorder %s18, %s21
    %p30 = scmp.eq.s32.totalorder %s13, 1
    %p31 = por %p29, %p30
    %p32 = scmp.ne.s32.totalorder %s21, %s22
    %p33 = scmp.eq.s32.totalorder %s13, 0
    %p34 = por %p32, %p33
    %p35 = scmp.ne.s32.totalorder %s21, %s22
    %p36 = scmp.eq.s32.totalorder %s14, 1
    %p37 = por %p35, %p36
    %p39 = scmp.ne.s32.totalorder %s22, %s38
    %p40 = scmp.eq.s32.totalorder %s14, 0
    %p41 = por %p39, %p40
    %s43 = sadd.s32 %s42, 1
    %p46 = scmp.eq.s32.totalorder %s8, 1
    %p47 = scmp.ne.s32.totalorder %s42, %s44
    %p48 = scmp.eq.s32.totalorder %s8, 0
    %p49 = por %p47, %p48
    %p50 = scmp.ne.s32.totalorder %s42, %s44
    %p51 = scmp.eq.s32.totalorder %s13, 1
    %p52 = por %p50, %p51
    %p53 = scmp.ne.s32.totalorder %s44, %s45
    %p54 = scmp.eq.s32.totalorder %s13, 0
    %p55 = por %p53, %p54
    %p56 = scmp.ne.s32.totalorder %s44, %s45
    %p57 = scmp.eq.s32.totalorder %s14, 1
    %p58 = por %p56, %p57
    %p60 = scmp.ne.s32.totalorder %s45, %s59
    %p61 = scmp.eq.s32.totalorder %s14, 0
    %p62 = por %p60, %p61
    %s63 = ssub.s32 %s8, %s15
    %p64 = scmp.eq.s32.totalorder %s63, 0
    %s66 = sadd.s32 %s65, 1
    %s67 = scalar_select %p64, %s65, %s66
    %p70 = pneg %p64
    %p71 = scmp.eq.s32.totalorder %s8, 1
    %p72 = por %p70, %p71
    %p73 = scmp.ne.s32.totalorder %s65, %s68
    %p74 = scmp.eq.s32.totalorder %s8, 0
    %p75 = por %p73, %p74
    %p76 = scmp.ne.s32.totalorder %s65, %s68
    %p77 = scmp.eq.s32.totalorder %s13, 1
    %p78 = por %p76, %p77
    %p79 = scmp.ne.s32.totalorder %s68, %s69
    %p80 = scmp.eq.s32.totalorder %s13, 0
    %p81 = por %p79, %p80
    %p82 = scmp.ne.s32.totalorder %s68, %s69
    %p83 = scmp.eq.s32.totalorder %s14, 1
    %p84 = por %p82, %p83
    %p86 = scmp.ne.s32.totalorder %s69, %s85
    %p87 = scmp.eq.s32.totalorder %s14, 0
    %p88 = por %p86, %p87
    %p89 = scmp.le.s32.totalorder 1, %s8
    %p90 = scmp.lt.s32.totalorder %s8, 3
    %p91 = pnand %p89, %p90
    %p92 = pneg %p91
    // Predicated region
    $region9: #{conv2d_cd.1} parent=5 // pred_check
      _
    $region10: #{conv2d_cd.1} parent=5 // pred_check_branch
      %94 = sbr.rel (%p91) target = $region12
    $region11: #{conv2d_cd.1} parent=5 // pred_region
      %s95 = ssub.s32 %s8, 1
      // Predicated region
      $region13: #{conv2d_cd.1} parent=11 // pred_check
        %p96 = pneg %p55
      $region14: #{conv2d_cd.1} parent=11 // pred_check_branch
        %98 = sbr.rel (%p96) target = $region16
      $region15: #{conv2d_cd.1} parent=11 // pred_region
        _
      $region16: #{conv2d_cd.1} parent=11 // pred_fallthru
        _
    $region12: #{conv2d_cd.1} parent=5 // pred_fallthru
      _
    %p99 = scmp.lt.s32.totalorder %s8, 2
    // Predicated region
    $region17: #{conv2d_cd.1} parent=5 // pred_check
      %p100 = pneg %p99
    $region18: #{conv2d_cd.1} parent=5 // pred_check_branch
      %102 = sbr.rel (%p100) target = $region20
    $region19: #{conv2d_cd.1} parent=5 // pred_region
      // Predicated region
      $region21: #{conv2d_cd.1} parent=19 // pred_check
        %p103 = pneg %p28
      $region22: #{conv2d_cd.1} parent=19 // pred_check_branch
        %105 = sbr.rel (%p103) target = $region24
      $region23: #{conv2d_cd.1} parent=19 // pred_region
        %s106 = smul.u32 2, %s8
        %p107 = scmp.lt.s32.totalorder %s106, 3
        %s108 = scalar_select %p107, %s106, 3
        %s109 = smul.addr %s108, 2
        %s110 = smul.addr %s109, 8
        %s111 = scalar_lea.vmem %s0, %s110
        %s112 = smul.u32 2, %s8
      $region24: #{conv2d_cd.1} parent=19 // pred_fallthru
        _
    $region20: #{conv2d_cd.1} parent=5 // pred_fallthru
      _
    %p113 = scmp.le.s32.totalorder 1, %s8
    %p114 = scmp.lt.s32.totalorder %s8, 3
    %p115 = pnand %p113, %p114
    %p116 = pneg %p115
    // Predicated region
    $region25: #{conv2d_cd.1} parent=5 // pred_check
      _
    $region26: #{conv2d_cd.1} parent=5 // pred_check_branch
      %118 = sbr.rel (%p115) target = $region28
    $region27: #{conv2d_cd.1} parent=5 // pred_region
      %s119 = ssub.s32 %s8, 1
      %s120 = smul.u32 2, %s13
      %p121 = scmp.lt.s32.totalorder %s120, 3
      %s122 = scalar_select %p121, %s120, 3
      %s123 = smul.addr %s122, 2
      %s124 = smul.addr %s123, 8
      %s125 = scalar_lea.vmem %s0, %s124
      %p126 = pneg %p34
      %p127 = pneg %p31
      %p128 = pneg %p55
      %p129 = pneg %p52
      %p130 = pneg %p81
      %p131 = pneg %p78
      %s132 = smul.u32 2, %s13
      %p133 = scmp.lt.s32.totalorder %s132, 3
      %s134 = scalar_select %p133, %s132, 3
      %s135 = smul.addr %s134, 8
      %s136 = scalar_lea.vmem %s2, %s135
      %s137 = smul.u32 2, %s13
      %p138 = scmp.lt.s32.totalorder %s137, 3
      %s139 = scalar_select %p138, %s137, 3
      %s140 = smul.addr %s139, 2
      %s141 = smul.addr %s140, 8
      %s142 = scalar_lea.vmem %s0, %s141
      %s143 = smul.u32 2, %s13
      %s144 = smul.u32 2, %s13
      %p145 = scmp.lt.s32.totalorder %s144, 3
      %s146 = scalar_select %p145, %s144, 3
      %s147 = smul.addr %s146, 8
      %s148 = scalar_lea.vmem %s2, %s147
      %s149 = smul.u32 2, %s13
      %v150 = vld [vmem:[%s142] sm:$0xff]
      %v151 = vld [vmem:[%s142 + $0x8] sm:$0xff]
      %v152 = vld [vmem:[%s142 + $0x10] sm:$0xff]
      %v153 = vld [vmem:[%s142 + $0x18] sm:$0xff]
      %v154 = vld [vmem:[%s1] sm:$0xff]
      %v155 = vld [vmem:[%s1 + $0x8] sm:$0xff]
      %v156 = vld [vmem:[%s1 + $0x10] sm:$0xff]
      %v157 = vld [vmem:[%s1 + $0x18] sm:$0xff]
      %v158 = vld [vmem:[%s1 + $0x20] sm:$0xff]
      %v159 = vld [vmem:[%s1 + $0x28] sm:$0xff]
      %v160 = vld [vmem:[%s1 + $0x30] sm:$0xff]
      %v161 = vld [vmem:[%s1 + $0x38] sm:$0xff]
      %v162 = vld [vmem:[%s1 + $0x40] sm:$0xff]
      %v163 = vld [vmem:[%s1 + $0x48] sm:$0xff]
      %v164 = vld [vmem:[%s1 + $0x50] sm:$0xff]
      %v165 = vld [vmem:[%s1 + $0x58] sm:$0xff]
      %v166 = vld [vmem:[%s1 + $0x60] sm:$0xff]
      %v167 = vld [vmem:[%s1 + $0x68] sm:$0xff]
      %v168 = vld [vmem:[%s1 + $0x70] sm:$0xff]
      %v169 = vld [vmem:[%s1 + $0x78] sm:$0xff]
      %v170 = vld [vmem:[%s1 + $0x80] sm:$0xff]
      %v171 = vld [vmem:[%s1 + $0x88] sm:$0xff]
      %v172 = vld [vmem:[%s1 + $0x90] sm:$0xff]
      %v173 = vld [vmem:[%s1 + $0x98] sm:$0xff]
      %v174 = vld [vmem:[%s1 + $0xa0] sm:$0xff]
      %v175 = vld [vmem:[%s1 + $0xa8] sm:$0xff]
      %v176 = vld [vmem:[%s1 + $0xb0] sm:$0xff]
      %v177 = vld [vmem:[%s1 + $0xb8] sm:$0xff]
      %vm178 = vcmask 523264
      %v180 = vsel %vm178, %v151, 0
      %v183 = vsel %vm178, %v153, 0
      %185 = vmatprep.subr.mxu0 0.0
      %186 = vmatpush1.msra.mxu0 %v154
      %187 = vmatprep.subr.mxu0 0.0
      %188 = vmatpush1.msra.mxu0 %v155
      %189 = vmatprep.subr.mxu0 0.0
      %190 = vmatpush1.msra.mxu0 %v156
      %191 = vmatprep.subr.mxu0 0.0
      %192 = vmatpush1.msra.mxu0 %v157
      %193 = vmatprep.subr.mxu0 0.0
      %194 = vmatpush1.msra.mxu0 %v158
      %195 = vmatprep.subr.mxu0 0.0
      %196 = vmatpush1.msra.mxu0 %v159
      %197 = vmatprep.subr.mxu0 0.0
      %198 = vmatpush1.msra.mxu0 %v160
      %199 = vmatprep.subr.mxu0 0.0
      %200 = vmatpush1.msra.mxu0 %v161
      %201 = vmatprep.subr.mxu0 0.0
      %202 = vmatpush1.msra.mxu0 %v162
      %203 = vmatprep.subr.mxu0 0.0
      %204 = vmatpush1.msra.mxu0 %v163
      %205 = vmatprep.subr.mxu0 0.0
      %206 = vmatpush1.msra.mxu0 %v164
      %207 = vmatprep.subr.mxu0 0.0
      %208 = vmatpush1.msra.mxu0 %v165
      %209 = vmatprep.subr.mxu0 0.0
      %210 = vmatpush1.msra.mxu0 %v166
      %211 = vmatprep.subr.mxu0 0.0
      %212 = vmatpush1.msra.mxu0 %v167
      %213 = vmatprep.subr.mxu0 0.0
      %214 = vmatpush1.msra.mxu0 %v168
      %215 = vmatprep.subr.mxu0 0.0
      %216 = vmatpush1.msra.mxu0 %v169
      %217 = vmatprep.subr.mxu0 0.0
      %218 = vmatpush1.msra.mxu0 %v170
      %219 = vmatprep.subr.mxu0 0.0
      %220 = vmatpush1.msra.mxu0 %v171
      %221 = vmatprep.subr.mxu0 0.0
      %222 = vmatpush1.msra.mxu0 %v172
      %223 = vmatprep.subr.mxu0 0.0
      %224 = vmatpush1.msra.mxu0 %v173
      %225 = vmatprep.subr.mxu0 0.0
      %226 = vmatpush1.msra.mxu0 %v174
      %227 = vmatprep.subr.mxu0 0.0
      %228 = vmatpush1.msra.mxu0 %v175
      %229 = vmatprep.subr.mxu0 0.0
      %230 = vmatpush1.msra.mxu0 %v176
      %231 = vmatprep.subr.mxu0 0.0
      %232 = vmatpush1.msra.mxu0 %v177
      %233 = vmatprep.subr.mxu0 0.0
      %234 = vmatpush1.msra.mxu0 0.0
      %235 = vmatprep.subr.mxu0 0.0
      %236 = vmatpush1.msra.mxu0 0.0
      %237 = vmatprep.subr.mxu0 0.0
      %238 = vmatpush1.msra.mxu0 0.0
      %239 = vmatprep.subr.mxu0 0.0
      %240 = vmatpush1.msra.mxu0 0.0
      %241 = vmatprep.subr.mxu0 0.0
      %242 = vmatpush1.msra.mxu0 0.0
      %243 = vmatprep.subr.mxu0 0.0
      %244 = vmatpush1.msra.mxu0 0.0
      %245 = vmatprep.subr.mxu0 0.0
      %246 = vmatpush1.msra.mxu0 0.0
      %247 = vmatprep.subr.mxu0 0.0
      %248 = vmatpush1.msra.mxu0 0.0
      %249 = vmatprep.mubr.f32.mxu0 %v180
      %250 = vmatmul.mubr.f32.gmra.mrb[0].mxu0 %v150
      %v251 = vpop.f32.mrb[0].mxu0
      %v252 = vadd.f32 0.0, %v251
      %v253 = vpop.f32.mrb[0].mxu0
      %254 = vmatprep.mubr.f32.mxu0 %v183
      %255 = vmatmul.mubr.f32.gmra.mrb[0].mxu0 %v152
      %v256 = vpop.f32.mrb[0].mxu0
      %v257 = vadd.f32 0.0, %v256
      %v258 = vpop.f32.mrb[0].mxu0
      %259 = vdwg.mxu0
      %260 = vst [vmem:[%s148] sm:$0xff] %v252
      %261 = vst [vmem:[%s148 + $0x8] sm:$0xff] %v257
      %s262 = smul.u32 2, %s13
      %p263 = scmp.lt.s32.totalorder %s262, 3
      %s264 = scalar_select %p263, %s262, 3
      %s265 = smul.addr %s264, 8
      %s266 = scalar_lea.vmem %s2, %s265
      // Predicated region
      $region29: #{conv2d_cd.1} parent=27 // pred_check
        %p267 = pneg %p78
      $region30: #{conv2d_cd.1} parent=27 // pred_check_branch
        %269 = sbr.rel (%p267) target = $region32
      $region31: #{conv2d_cd.1} parent=27 // pred_region
        %s270 = smul.u32 2, %s13
      $region32: #{conv2d_cd.1} parent=27 // pred_fallthru
        _
    $region28: #{conv2d_cd.1} parent=5 // pred_fallthru
      _
    %p271 = scmp.le.s32.totalorder 2, %s8
    // Predicated region
    $region33: #{conv2d_cd.1} parent=5 // pred_check
      %p272 = pneg %p271
    $region34: #{conv2d_cd.1} parent=5 // pred_check_branch
      %274 = sbr.rel (%p272) target = $region36
    $region35: #{conv2d_cd.1} parent=5 // pred_region
      %s275 = ssub.s32 %s8, 2
      // Predicated region
      $region37: #{conv2d_cd.1} parent=35 // pred_check
        %p276 = pneg %p84
      $region38: #{conv2d_cd.1} parent=35 // pred_check_branch
        %278 = sbr.rel (%p276) target = $region40
      $region39: #{conv2d_cd.1} parent=35 // pred_region
        %s279 = smul.u32 2, %s14
        %p280 = scmp.lt.s32.totalorder %s279, 3
        %s281 = scalar_select %p280, %s279, 3
        %s282 = smul.addr %s281, 8
        %s283 = scalar_lea.vmem %s2, %s282
      $region40: #{conv2d_cd.1} parent=35 // pred_fallthru
        _
    $region36: #{conv2d_cd.1} parent=5 // pred_fallthru
      _
  $region6: #{conv2d_cd.1} parent=0 // loop_footer
    %s12 = sadd.s32 1, %s8
  $region7: #{conv2d_cd.1} parent=0 // loop_footer_branch
    %7 = sbr.rel target = $region3
  $region8: #{conv2d_cd.1} parent=0 // loop_exit
    _

</llo_original>
